<compile_context>
chip_gen: v5e
topology: v5e:2x2
jax: 0.10.0
libtpu: 0.0.40
codegen_flags: <defaults>
</compile_context>

<pallas_src>
import jax
import jax.numpy as jnp
from jax import lax
from jax.experimental import pallas as pl
from jax.experimental.pallas import tpu as pltpu


# ----------------------------------------------------------------------------
# Kernel
# ----------------------------------------------------------------------------
def rope_kernel(x_ref, c_ref, s_ref, o_ref):
    """RoPE hot path on a (1, TS, L) tile (L = fold * head_dim, lane-dense).

    x_ref : (1, TS, L) input tile
    c_ref : (TS, L)    interleaved cos table    [ c0, c0, c1, c1, ...]  (f32)
    s_ref : (TS, L)    sign-alternating sin tbl [-s0, s0,-s1, s1, ...]  (f32)
    o_ref : (1, TS, L) output tile

    out[2k]   = x[2k]  *c_k - x[2k+1]*s_k
    out[2k+1] = x[2k+1]*c_k + x[2k]  *s_k
    """
    x = x_ref[...].astype(jnp.float32)
    L = x.shape[-1]
    # Neighbours within each interleaved pair.  The roll wrap-around lanes are
    # never selected: even lanes pick x_next (i+1, stays in the pair), odd
    # lanes pick x_prev (i-1), and L (and every folded D segment) is even, so
    # the selected neighbour always stays inside its own pair / segment.
    x_next = pltpu.roll(x, shift=L - 1, axis=2)   # lane i <- x[(i + 1) % L]
    x_prev = pltpu.roll(x, shift=1, axis=2)       # lane i <- x[(i - 1) % L]
    lane = lax.broadcasted_iota(jnp.int32, x.shape, 2)
    rot = jnp.where((lane & 1) == 0, x_next, x_prev)
    out = x * c_ref[...][None] + rot * s_ref[...][None]
    o_ref[...] = out.astype(o_ref.dtype)


# ----------------------------------------------------------------------------
# Table construction (the analogue of the torch module's persistent buffers;
# built once for (dim, max_seq_len) and reused across calls)
# ----------------------------------------------------------------------------
def make_rope_tables(dim, max_seq_len, base=10000.0):
    """Returns f32 tables of shape (max_seq_len, dim):
       cos_i    = [ c0, c0, c1, c1, ...]
       sin_sgn  = [-s0, s0,-s1, s1, ...]
    """
    theta = 1.0 / (base ** (jnp.arange(0, dim, 2, dtype=jnp.float32)[: dim // 2] / dim))
    angles = jnp.einsum("i,j->ij", jnp.arange(max_seq_len, dtype=jnp.float32), theta)
    cos = jnp.cos(angles)                                       # (max_S, D/2)
    sin = jnp.sin(angles)
    cos_i = jnp.repeat(cos, 2, axis=-1).astype(jnp.float32)     # (max_S, D)
    sin_i = jnp.repeat(sin, 2, axis=-1).astype(jnp.float32)
    even = (jnp.arange(dim) % 2) == 0
    sin_sgn = jnp.where(even, -sin_i, sin_i).astype(jnp.float32)
    return cos_i, sin_sgn


# ----------------------------------------------------------------------------
# Wrapper
# ----------------------------------------------------------------------------
def _vmem_budgets():
    """(tile working-set budget, scoped vmem limit) per chip generation."""
    try:
        phys = pltpu.get_tpu_info().vmem_capacity_bytes
    except Exception:
        phys = 64 * 2**20                      # conservative (v7x-sized)
    if phys >= 96 * 2**20:                     # v5e / v6e: 128 MiB physical
        return 48 * 2**20, 64 * 2**20
    return 24 * 2**20, 32 * 2**20              # v7x: 64 MiB physical


def rope_pallas(x, cos_table, sin_signed_table, *, seq_tile=2048, min_lanes=128):
    """Apply RoPE to x of shape (B, S, D); returns (1, B, S, D) like torch."""
    B, S, D = x.shape
    assert D % 2 == 0, "rotary dim must be even"
    assert cos_table.shape[-1] == D and sin_signed_table.shape[-1] == D
    assert S <= cos_table.shape[0], "seq_len exceeds max_seq_len of the RoPE tables"

    c1 = cos_table[:S]
    s1 = sin_signed_table[:S]

    # --- lane-dense layout: fold consecutive sequence rows into the lane dim
    # until the last dim reaches >= min_lanes.  Rotary pairs never straddle a
    # row boundary (D is even), so the in-kernel rolls/select stay correct.
    fold = 1
    while D * fold < min_lanes and S % (2 * fold) == 0:
        fold *= 2
    S_f = S // fold
    L = D * fold
    x_f = x.reshape(B, S_f, L)
    c_f = c1.reshape(S_f, L)
    s_f = s1.reshape(S_f, L)

    # --- tile the (folded) sequence axis; size from the real dtypes and the
    # real buffer count (double-buffered x + out in x.dtype, 2 f32 tables).
    budget, vmem_limit = _vmem_budgets()
    xb = jnp.dtype(x.dtype).itemsize
    sub = max(8, 32 // xb)                      # sublane packing of x.dtype
    bytes_per_row = (2 * xb + 2 * xb + 2 * 2 * 4) * L
    budget_rows = max(sub, budget // bytes_per_row)
    ts_target = min(seq_tile, budget_rows)
    if ts_target >= S_f:
        ts = S_f                                # full extent -> always legal
    else:
        ts = min(S_f, max(sub, (ts_target // sub) * sub))

    # keep >= 2 grid steps per TensorCore (v7x has 2 TCs) when B is small
    min_steps = 4
    if S_f > sub and B * pl.cdiv(S_f, ts) < min_steps:
        want_tiles = -(-min_steps // B)
        ts = min(ts, max(sub, (S_f // want_tiles) // sub * sub))

    # batch innermost (fastest varying): the table block index is constant
    # across consecutive steps, so the f32 tables are DMA'd once per s-tile,
    # not once per (s-tile, batch).
    grid = (pl.cdiv(S_f, ts), B)

    out = pl.pallas_call(
        rope_kernel,
        out_shape=jax.ShapeDtypeStruct((B, S_f, L), x.dtype),
        grid=grid,
        in_specs=[
            pl.BlockSpec((1, ts, L), lambda s, b: (b, s, 0)),
            pl.BlockSpec((ts, L), lambda s, b: (s, 0)),
            pl.BlockSpec((ts, L), lambda s, b: (s, 0)),
        ],
        out_specs=pl.BlockSpec((1, ts, L), lambda s, b: (b, s, 0)),
        compiler_params=pltpu.CompilerParams(
            # both axes independent -> shardable across v7x's 2 TensorCores
            dimension_semantics=("parallel", "parallel"),
            vmem_limit_bytes=vmem_limit,
        ),
    )(x_f, c_f, s_f)

    # Torch broadcasting (B,S,D) * (1,1,S,D) -> (1,B,S,D); add the leading dim.
    return out.reshape(B, S, D)[None]


# ----------------------------------------------------------------------------
# Pure-JAX reference (literal transcription of the torch forward)
# ----------------------------------------------------------------------------
def rope_reference(x, dim, max_seq_len, base=10000.0):
    theta = 1.0 / (base ** (jnp.arange(0, dim, 2, dtype=jnp.float32)[: dim // 2] / dim))
    angles = jnp.einsum("i,j->ij", jnp.arange(max_seq_len, dtype=jnp.float32), theta)
    cos, sin = jnp.cos(angles), jnp.sin(angles)
    S = x.shape[1]
    c1 = jnp.repeat(cos[:S][None, None], 2, axis=-1)          # (1, 1, S, D)
    s1 = jnp.repeat(sin[:S][None, None], 2, axis=-1)
    xr = x.reshape(x.shape[:-1] + (-1, 2))
    x1, x2 = xr[..., 0], xr[..., 1]
    rot = jnp.stack([-x2, x1], axis=-1).reshape(x.shape)
    return x * c1 + rot * s1                                   # -> (1, B, S, D)


if __name__ == "__main__":
    # TODO(synk): the torch forward also computes rope_x2 (pair-grouped variant)
    # but discards it; only the returned rope_x1 path is implemented.
    key = jax.random.PRNGKey(0)

    def run_case(sub_key, B, S, D, max_seq_len, seq_tile=2048):
        x = jax.random.normal(sub_key, (B, S, D), dtype=jnp.float32)
        cos_t, sin_t = make_rope_tables(D, max_seq_len)   # built once, like the torch buffers
        y = jax.block_until_ready(rope_pallas(x, cos_t, sin_t, seq_tile=seq_tile))
        y_ref = rope_reference(x, D, max_seq_len)
        assert y.shape == y_ref.shape == (1, B, S, D), (y.shape, y_ref.shape)
        assert jnp.allclose(y, y_ref, atol=1e-5, rtol=1e-5), \
            f"mismatch vs reference for shape {(B, S, D)}"

    # primary small shape from the module spec (folded, single tile)
    run_case(jax.random.fold_in(key, 0), B=2, S=8, D=32, max_seq_len=16)
    # multi-tile + ragged last tile + batch-inner table reuse (folded path)
    run_case(jax.random.fold_in(key, 1), B=2, S=96, D=32, max_seq_len=128, seq_tile=16)
    # no-fold path (D >= 128) + ragged tiles + the >=2-steps-per-core clamp
    run_case(jax.random.fold_in(key, 2), B=1, S=200, D=128, max_seq_len=256)

    print("KERNEL_OK")
</pallas_src>

<mosaic_0001>
module attributes {stable_mosaic.version = 11 : i64} {
  func.func @rope_kernel(%arg0: i32, %arg1: i32, %arg2: memref<1x2x128xf32, #tpu.memory_space<vmem>>, %arg3: memref<2x128xf32, #tpu.memory_space<vmem>>, %arg4: memref<2x128xf32, #tpu.memory_space<vmem>>, %arg5: memref<1x2x128xf32, #tpu.memory_space<vmem>>) attributes {dimension_semantics = [#tpu.dimension_semantics<parallel>, #tpu.dimension_semantics<parallel>], iteration_bounds = array<i64: 1, 2>, scalar_prefetch = 0 : i64, scratch_operands = 0 : i64, tpu.core_type = #tpu.core_type<tc>, window_params = [{transform_indices = @transform_0, window_bounds = array<i64: 1, 2, 128>}, {transform_indices = @transform_1, window_bounds = array<i64: 2, 128>}, {transform_indices = @transform_2, window_bounds = array<i64: 2, 128>}, {transform_indices = @transform_3, window_bounds = array<i64: 1, 2, 128>}]} {
    %c0 = arith.constant 0 : index
    %c0_0 = arith.constant 0 : index
    %c0_1 = arith.constant 0 : index
    %0 = vector.load %arg2[%c0, %c0_0, %c0_1] : memref<1x2x128xf32, #tpu.memory_space<vmem>>, vector<1x2x128xf32>
    %c127_i32 = arith.constant 127 : i32
    %1 = tpu.dynamic_rotate %0 by %c127_i32 dim 2 : vector<1x2x128xf32>, i32 -> vector<1x2x128xf32>
    %c1_i32 = arith.constant 1 : i32
    %2 = tpu.dynamic_rotate %0 by %c1_i32 dim 2 : vector<1x2x128xf32>, i32 -> vector<1x2x128xf32>
    %3 = tpu.iota {dimensions = array<i32: 2>} : vector<1x2x128xi32>
    %c1_i32_2 = arith.constant 1 : i32
    %4 = vector.broadcast %c1_i32_2 : i32 to vector<1x2x128xi32>
    %5 = arith.andi %3, %4 : vector<1x2x128xi32>
    %c0_i32 = arith.constant 0 : i32
    %6 = vector.broadcast %c0_i32 : i32 to vector<1x2x128xi32>
    %7 = arith.cmpi eq, %5, %6 : vector<1x2x128xi32>
    %8 = arith.select %7, %1, %2 : vector<1x2x128xi1>, vector<1x2x128xf32>
    %c0_3 = arith.constant 0 : index
    %c0_4 = arith.constant 0 : index
    %9 = vector.load %arg3[%c0_3, %c0_4] : memref<2x128xf32, #tpu.memory_space<vmem>>, vector<2x128xf32>
    %10 = vector.shape_cast %9 : vector<2x128xf32> to vector<1x2x128xf32>
    %11 = arith.mulf %0, %10 : vector<1x2x128xf32>
    %c0_5 = arith.constant 0 : index
    %c0_6 = arith.constant 0 : index
    %12 = vector.load %arg4[%c0_5, %c0_6] : memref<2x128xf32, #tpu.memory_space<vmem>>, vector<2x128xf32>
    %13 = vector.shape_cast %12 : vector<2x128xf32> to vector<1x2x128xf32>
    %14 = arith.mulf %8, %13 : vector<1x2x128xf32>
    %15 = arith.addf %11, %14 : vector<1x2x128xf32>
    %c0_7 = arith.constant 0 : index
    %c0_8 = arith.constant 0 : index
    %c0_9 = arith.constant 0 : index
    %16 = vector.load %arg5[%c0_7, %c0_8, %c0_9] : memref<1x2x128xf32, #tpu.memory_space<vmem>>, vector<1x2x128xf32>
    tpu.vector_store %arg5[%c0_7, %c0_8, %c0_9], %15 {strides = array<i32>} : memref<1x2x128xf32, #tpu.memory_space<vmem>>, vector<1x2x128xf32>,
    return
  }
  func.func @transform_0(%arg0: i32, %arg1: i32) -> (i32, i32, i32) {
    %c0_i32 = arith.constant 0 : i32
    %c0_i32_0 = arith.constant 0 : i32
    return %arg1, %arg0, %c0_i32 : i32, i32, i32
  }
  func.func @transform_1(%arg0: i32, %arg1: i32) -> (i32, i32) {
    %c0_i32 = arith.constant 0 : i32
    %c0_i32_0 = arith.constant 0 : i32
    return %arg0, %c0_i32 : i32, i32
  }
  func.func @transform_2(%arg0: i32, %arg1: i32) -> (i32, i32) {
    %c0_i32 = arith.constant 0 : i32
    %c0_i32_0 = arith.constant 0 : i32
    return %arg0, %c0_i32 : i32, i32
  }
  func.func @transform_3(%arg0: i32, %arg1: i32) -> (i32, i32, i32) {
    %c0_i32 = arith.constant 0 : i32
    %c0_i32_0 = arith.constant 0 : i32
    return %arg1, %arg0, %c0_i32 : i32, i32, i32
  }
}

</mosaic_0001>

<llo_original>
// kernel: tpu_custom_call.1
$region0: #{tpu_custom_call.1}
  #allocation0 [shape = 'u32[]', space=smem, size = 0x4, offset = 0x4, fixed_abs, tag = 'smem constant byte address 0x4 - core index']
  #allocation1 [shape = 'u32[72,128]{1,0:T(1,128)}', space=vmem, size = 0x9000, scoped, tag = 'internal scratch']
  %s0 = inlined_call_operand.hbm [shape: f32[2,2,128], index: 0, kind: input, shape index: {}]
  %s1 = inlined_call_operand.hbm [shape: f32[2,128], index: 1, kind: input, shape index: {}]
  %s2 = inlined_call_operand.hbm [shape: f32[2,128], index: 2, kind: input, shape index: {}]
  %s3 = inlined_call_operand.hbm [shape: f32[2,2,128], index: 3, kind: output, shape index: {}]
  %s4 = sld [smem:[#allocation0]]
  $region57: #{tpu_custom_call.1} parent=0
    _
  %s6 = ssub.s32 1, %s4
  %s7 = scalar_select 0, %s6, %s4
  $region1: #{tpu_custom_call.1} parent=0
    #allocation2 [shape = 'u8[2048]{0}', space=vmem, size = 0x800, scoped, tag = 'input window, operand 0']
    #allocation3 [shape = 's32[2]{0}', space=sflag, size = 0x8, scoped, tag = 'scoped memory for tpu_custom_call.1']
    #allocation4 [shape = 's32[2]{0}', space=sflag, size = 0x8, scoped, tag = 'scoped memory for tpu_custom_call.1']
    #allocation5 [shape = 'u8[1024]{0}', space=vmem, size = 0x400, scoped, tag = 'input window, operand 1, single buffered']
    #allocation6 [shape = 's32[1]{0}', space=sflag, size = 0x4, scoped, tag = 'scoped memory for tpu_custom_call.1']
    #allocation7 [shape = 'u8[1024]{0}', space=vmem, size = 0x400, scoped, tag = 'input window, operand 2, single buffered']
    #allocation8 [shape = 'u8[2048]{0}', space=vmem, size = 0x800, scoped, tag = 'output window, operand 0']
    %8 = vsyncpa [#allocation3], 0
    %s9 = scalar_lea.sflag [#allocation3], 1
    %10 = vsyncpa %s9, 0
    %11 = vsyncpa [#allocation6], 0
    %12 = vsyncpa [#allocation4], 0
    %s13 = scalar_lea.sflag [#allocation4], 1
    %14 = vsyncpa %s13, 0
    loop: start=0, step=1, limit=4
    $region2: #{tpu_custom_call.1} parent=1 // loop_pre_header
      _
    $region3: #{tpu_custom_call.1} parent=1 // loop_header
      %s16 = sphi 0, %s20
      %p17 = scmp.ge.s32.totalorder %s16, 4
      %s23 = sphi 0, %s35
      %s24 = sphi 0, %s31
      %s25 = sphi 0, %s23
      %s26 = sphi 0, %s24
      %s27 = sphi 0, %s25
      %s28 = sphi 0, %s26
      %s40 = sphi 0, %s42
      %s43 = sphi 0, %s40
      %s44 = sphi 0, %s43
      %s60 = sphi 0, %s44
      %s66 = sphi 0, %s68
      %s69 = sphi 0, %s66
      %s70 = sphi 0, %s69
      %s86 = sphi 0, %s70
      %s92 = sphi 0, %s94
      %s95 = sphi 0, %s92
      %s96 = sphi 0, %s95
      %s112 = sphi 0, %s96
      %s120 = sphi 0, %s122
      %s123 = sphi 0, %s120
      %s124 = sphi 0, %s123
      %s140 = sphi 0, %s124
    $region4: #{tpu_custom_call.1} parent=1 // loop_header_branch
      %19 = sbr.rel (%p17) target = $region8
    $region5: #{tpu_custom_call.1} parent=1 // loop_body
      %s21 = ssub.s32 %s16, 1
      %s22 = ssub.s32 %s16, 2
      %s29 = sadd.s32 1, %s24
      %p30 = scmp.ge.s32.totalorder %s29, 2
      %s31 = scalar_select %p30, 0, %s29
      %s32 = sadd.s32 1, %s23
      %s33 = scalar_select %p30, %s32, %s23
      %p34 = scmp.ge.s32.totalorder %s33, 1
      %s35 = scalar_select %p34, 0, %s33
      %s36 = ssub.s32 %s24, %s31
      %s37 = ssub.s32 %s23, %s35
      %s38 = sor.u32 %s36, %s37
      %p39 = scmp.eq.s32.totalorder %s38, 0
      %s41 = sadd.s32 %s40, 1
      %s42 = scalar_select %p39, %s40, %s41
      %p45 = pneg %p39
      %p46 = scmp.eq.s32.totalorder %s16, 1
      %p47 = por %p45, %p46
      %p48 = scmp.ne.s32.totalorder %s40, %s43
      %p49 = scmp.eq.s32.totalorder %s16, 0
      %p50 = por %p48, %p49
      %p51 = scmp.ne.s32.totalorder %s40, %s43
      %p52 = scmp.eq.s32.totalorder %s21, 1
      %p53 = por %p51, %p52
      %p54 = scmp.ne.s32.totalorder %s43, %s44
      %p55 = scmp.eq.s32.totalorder %s21, 0
      %p56 = por %p54, %p55
      %p57 = scmp.ne.s32.totalorder %s43, %s44
      %p58 = scmp.eq.s32.totalorder %s22, 1
      %p59 = por %p57, %p58
      %p61 = scmp.ne.s32.totalorder %s44, %s60
      %p62 = scmp.eq.s32.totalorder %s22, 0
      %p63 = por %p61, %p62
      %s64 = ssub.s32 %s23, %s35
      %p65 = scmp.eq.s32.totalorder %s64, 0
      %s67 = sadd.s32 %s66, 1
      %s68 = scalar_select %p65, %s66, %s67
      %p71 = pneg %p65
      %p72 = scmp.eq.s32.totalorder %s16, 1
      %p73 = por %p71, %p72
      %p74 = scmp.ne.s32.totalorder %s66, %s69
      %p75 = scmp.eq.s32.totalorder %s16, 0
      %p76 = por %p74, %p75
      %p77 = scmp.ne.s32.totalorder %s66, %s69
      %p78 = scmp.eq.s32.totalorder %s21, 1
      %p79 = por %p77, %p78
      %p80 = scmp.ne.s32.totalorder %s69, %s70
      %p81 = scmp.eq.s32.totalorder %s21, 0
      %p82 = por %p80, %p81
      %p83 = scmp.ne.s32.totalorder %s69, %s70
      %p84 = scmp.eq.s32.totalorder %s22, 1
      %p85 = por %p83, %p84
      %p87 = scmp.ne.s32.totalorder %s70, %s86
      %p88 = scmp.eq.s32.totalorder %s22, 0
      %p89 = por %p87, %p88
      %s90 = ssub.s32 %s23, %s35
      %p91 = scmp.eq.s32.totalorder %s90, 0
      %s93 = sadd.s32 %s92, 1
      %s94 = scalar_select %p91, %s92, %s93
      %p97 = pneg %p91
      %p98 = scmp.eq.s32.totalorder %s16, 1
      %p99 = por %p97, %p98
      %p100 = scmp.ne.s32.totalorder %s92, %s95
      %p101 = scmp.eq.s32.totalorder %s16, 0
      %p102 = por %p100, %p101
      %p103 = scmp.ne.s32.totalorder %s92, %s95
      %p104 = scmp.eq.s32.totalorder %s21, 1
      %p105 = por %p103, %p104
      %p106 = scmp.ne.s32.totalorder %s95, %s96
      %p107 = scmp.eq.s32.totalorder %s21, 0
      %p108 = por %p106, %p107
      %p109 = scmp.ne.s32.totalorder %s95, %s96
      %p110 = scmp.eq.s32.totalorder %s22, 1
      %p111 = por %p109, %p110
      %p113 = scmp.ne.s32.totalorder %s96, %s112
      %p114 = scmp.eq.s32.totalorder %s22, 0
      %p115 = por %p113, %p114
      %s116 = ssub.s32 %s24, %s31
      %s117 = ssub.s32 %s23, %s35
      %s118 = sor.u32 %s116, %s117
      %p119 = scmp.eq.s32.totalorder %s118, 0
      %s121 = sadd.s32 %s120, 1
      %s122 = scalar_select %p119, %s120, %s121
      %p125 = pneg %p119
      %p126 = scmp.eq.s32.totalorder %s16, 1
      %p127 = por %p125, %p126
      %p128 = scmp.ne.s32.totalorder %s120, %s123
      %p129 = scmp.eq.s32.totalorder %s16, 0
      %p130 = por %p128, %p129
      %p131 = scmp.ne.s32.totalorder %s120, %s123
      %p132 = scmp.eq.s32.totalorder %s21, 1
      %p133 = por %p131, %p132
      %p134 = scmp.ne.s32.totalorder %s123, %s124
      %p135 = scmp.eq.s32.totalorder %s21, 0
      %p136 = por %p134, %p135
      %p137 = scmp.ne.s32.totalorder %s123, %s124
      %p138 = scmp.eq.s32.totalorder %s22, 1
      %p139 = por %p137, %p138
      %p141 = scmp.ne.s32.totalorder %s124, %s140
      %p142 = scmp.eq.s32.totalorder %s22, 0
      %p143 = por %p141, %p142
      %p144 = scmp.le.s32.totalorder 1, %s16
      %p145 = scmp.lt.s32.totalorder %s16, 3
      %p146 = pnand %p144, %p145
      %p147 = pneg %p146
      // Predicated region
      $region9: #{tpu_custom_call.1} parent=5 // pred_check
        _
      $region10: #{tpu_custom_call.1} parent=5 // pred_check_branch
        %149 = sbr.rel (%p146) target = $region12
      $region11: #{tpu_custom_call.1} parent=5 // pred_region
        %s150 = ssub.s32 %s16, 1
        // Predicated region
        $region13: #{tpu_custom_call.1} parent=11 // pred_check
          %p151 = pneg %p82
        $region14: #{tpu_custom_call.1} parent=11 // pred_check_branch
          %153 = sbr.rel (%p151) target = $region16
        $region15: #{tpu_custom_call.1} parent=11 // pred_region
          %155 = vsyncadd [#allocation6], 0
          %s156 = smul.addr %s25, 2
          %s157 = scalar_lea.hbm %s1, %s156
          %s159 = sshll.u32 %s157, 4
          %s160 = int_to_ptr.hbm [resolvable:$true] %s159
          %s161 = sshll.u32 [#allocation5], 4
          %s162 = int_to_ptr.vmem [resolvable:$true] %s161
          %164 = dma.hbm_to_vmem [thread:$0]  %s160, 32, %s162, [#allocation6]
        $region16: #{tpu_custom_call.1} parent=11 // pred_fallthru
          _
        // Predicated region
        $region17: #{tpu_custom_call.1} parent=11 // pred_check
          %p165 = pneg %p108
        $region18: #{tpu_custom_call.1} parent=11 // pred_check_branch
          %167 = sbr.rel (%p165) target = $region20
        $region19: #{tpu_custom_call.1} parent=11 // pred_region
          %169 = vsyncadd [#allocation6], 0
          %s170 = smul.addr %s25, 2
          %s171 = scalar_lea.hbm %s2, %s170
          %s173 = sshll.u32 %s171, 4
          %s174 = int_to_ptr.hbm [resolvable:$true] %s173
          %s175 = sshll.u32 [#allocation7], 4
          %s176 = int_to_ptr.vmem [resolvable:$true] %s175
          %178 = dma.hbm_to_vmem [thread:$0]  %s174, 32, %s176, [#allocation6]
        $region20: #{tpu_custom_call.1} parent=11 // pred_fallthru
          _
      $region12: #{tpu_custom_call.1} parent=5 // pred_fallthru
        _
      %p179 = scmp.lt.s32.totalorder %s16, 2
      // Predicated region
      $region21: #{tpu_custom_call.1} parent=5 // pred_check
        %p180 = pneg %p179
      $region22: #{tpu_custom_call.1} parent=5 // pred_check_branch
        %182 = sbr.rel (%p180) target = $region24
      $region23: #{tpu_custom_call.1} parent=5 // pred_region
        // Predicated region
        $region25: #{tpu_custom_call.1} parent=23 // pred_check
          %p183 = pneg %p50
        $region26: #{tpu_custom_call.1} parent=23 // pred_check_branch
          %185 = sbr.rel (%p183) target = $region28
        $region27: #{tpu_custom_call.1} parent=23 // pred_region
          %s186 = sand.u32 %s40, 1
          %s187 = scalar_lea.sflag [#allocation3], %s186
          %s188 = sand.u32 %s40, 1
          %s189 = smul.addr %s188, 2
          %s190 = scalar_lea.vmem [#allocation2], %s189
          %192 = vsyncadd %s187, 0
          %s193 = sadd.s32 %s23, %s24
          %s194 = smul.addr %s193, 2
          %s195 = scalar_lea.hbm %s0, %s194
          %s197 = sshll.u32 %s195, 4
          %s198 = int_to_ptr.hbm [resolvable:$true] %s197
          %s199 = sshll.u32 %s190, 4
          %s200 = int_to_ptr.vmem [resolvable:$true] %s199
          %202 = dma.hbm_to_vmem [thread:$0]  %s198, 32, %s200, %s187
        $region28: #{tpu_custom_call.1} parent=23 // pred_fallthru
          _
      $region24: #{tpu_custom_call.1} parent=5 // pred_fallthru
        _
      %p203 = scmp.le.s32.totalorder 1, %s16
      %p204 = scmp.lt.s32.totalorder %s16, 3
      %p205 = pnand %p203, %p204
      %p206 = pneg %p205
      // Predicated region
      $region29: #{tpu_custom_call.1} parent=5 // pred_check
        _
      $region30: #{tpu_custom_call.1} parent=5 // pred_check_branch
        %208 = sbr.rel (%p205) target = $region32
      $region31: #{tpu_custom_call.1} parent=5 // pred_region
        %s209 = ssub.s32 %s16, 1
        %s210 = sand.u32 %s43, 1
        %s211 = scalar_lea.sflag [#allocation3], %s210
        %s212 = sand.u32 %s43, 1
        %s213 = smul.addr %s212, 2
        %s214 = scalar_lea.vmem [#allocation2], %s213
        // Predicated region
        $region33: #{tpu_custom_call.1} parent=31 // pred_check
          %p215 = pneg %p56
        $region34: #{tpu_custom_call.1} parent=31 // pred_check_branch
          %217 = sbr.rel (%p215) target = $region36
        $region35: #{tpu_custom_call.1} parent=31 // pred_region
          %219 = dma.done %s211, 32
        $region36: #{tpu_custom_call.1} parent=31 // pred_fallthru
          _
        // Predicated region
        $region37: #{tpu_custom_call.1} parent=31 // pred_check
          %p220 = pneg %p82
        $region38: #{tpu_custom_call.1} parent=31 // pred_check_branch
          %222 = sbr.rel (%p220) target = $region40
        $region39: #{tpu_custom_call.1} parent=31 // pred_region
          %224 = dma.done [#allocation6], 32
        $region40: #{tpu_custom_call.1} parent=31 // pred_fallthru
          _
        // Predicated region
        $region41: #{tpu_custom_call.1} parent=31 // pred_check
          %p225 = pneg %p108
        $region42: #{tpu_custom_call.1} parent=31 // pred_check_branch
          %227 = sbr.rel (%p225) target = $region44
        $region43: #{tpu_custom_call.1} parent=31 // pred_region
          %229 = dma.done [#allocation6], 32
        $region44: #{tpu_custom_call.1} parent=31 // pred_fallthru
          _
        %s230 = sand.u32 %s43, 1
        %s231 = scalar_lea.sflag [#allocation3], %s230
        %s232 = sand.u32 %s43, 1
        %s233 = smul.addr %s232, 2
        %s234 = scalar_lea.vmem [#allocation2], %s233
        %p235 = pneg %p56
        %p236 = pneg %p53
        %p237 = pneg %p82
        %p238 = pneg %p79
        %p239 = pneg %p108
        %p240 = pneg %p105
        %p241 = pneg %p136
        %p242 = pneg %p133
        %s243 = sand.u32 %s123, 1
        %s244 = scalar_lea.sflag [#allocation4], %s243
        %s245 = sand.u32 %s123, 1
        %s246 = smul.addr %s245, 2
        %s247 = scalar_lea.vmem [#allocation8], %s246
        %v248 = vld [vmem:[%s214] sm:$0x3]
        %249 = vrot.lane.b32.xlu0 %v248, 127
        %v250 = vpop.permute.xlu0 %249
        %251 = vrot.lane.b32.xlu0 %v248, 1
        %v252 = vpop.permute.xlu0 %251
        %v253 = vlaneseq
        %v254 = vand.u32 %v253, 127
        %v255 = vand.u32 %v254, 1
        %vm256 = vcmp.eq.s32.totalorder %v255, 0
        %v257 = vsel %vm256, %v250, %v252
        %v258 = vld [vmem:[#allocation5] sm:$0x3]
        %v259 = vmul.f32 %v248, %v258
        %v260 = vld [vmem:[#allocation7] sm:$0x3]
        %v261 = vmul.f32 %v257, %v260
        %v262 = vadd.f32 %v259, %v261
        %263 = vst [vmem:[%s247] sm:$0x3] %v262
        %s264 = sand.u32 %s123, 1
        %s265 = scalar_lea.sflag [#allocation4], %s264
        %s266 = sand.u32 %s123, 1
        %s267 = smul.addr %s266, 2
        %s268 = scalar_lea.vmem [#allocation8], %s267
        // Predicated region
        $region45: #{tpu_custom_call.1} parent=31 // pred_check
          %p269 = pneg %p133
        $region46: #{tpu_custom_call.1} parent=31 // pred_check_branch
          %271 = sbr.rel (%p269) target = $region48
        $region47: #{tpu_custom_call.1} parent=31 // pred_region
          %273 = vsyncadd %s265, 0
          %s274 = sadd.s32 %s25, %s26
          %s275 = smul.addr %s274, 2
          %s276 = scalar_lea.hbm %s3, %s275
          %s278 = sshll.u32 %s268, 4
          %s279 = int_to_ptr.vmem [resolvable:$true] %s278
          %s280 = sshll.u32 %s276, 4
          %s281 = int_to_ptr.hbm [resolvable:$true] %s280
          %283 = dma.vmem_to_hbm [thread:$0]  %s279, 32, %s281, %s265
        $region48: #{tpu_custom_call.1} parent=31 // pred_fallthru
          _
      $region32: #{tpu_custom_call.1} parent=5 // pred_fallthru
        _
      %p284 = scmp.le.s32.totalorder 2, %s16
      // Predicated region
      $region49: #{tpu_custom_call.1} parent=5 // pred_check
        %p285 = pneg %p284
      $region50: #{tpu_custom_call.1} parent=5 // pred_check_branch
        %287 = sbr.rel (%p285) target = $region52
      $region51: #{tpu_custom_call.1} parent=5 // pred_region
        %s288 = ssub.s32 %s16, 2
        // Predicated region
        $region53: #{tpu_custom_call.1} parent=51 // pred_check
          %p289 = pneg %p139
        $region54: #{tpu_custom_call.1} parent=51 // pred_check_branch
          %291 = sbr.rel (%p289) target = $region56
        $region55: #{tpu_custom_call.1} parent=51 // pred_region
          %s292 = sand.u32 %s124, 1
          %s293 = scalar_lea.sflag [#allocation4], %s292
          %s294 = sand.u32 %s124, 1
          %s295 = smul.addr %s294, 2
          %s296 = scalar_lea.vmem [#allocation8], %s295
          %298 = dma.done %s293, 32
        $region56: #{tpu_custom_call.1} parent=51 // pred_fallthru
          _
      $region52: #{tpu_custom_call.1} parent=5 // pred_fallthru
        _
    $region6: #{tpu_custom_call.1} parent=1 // loop_footer
      %s20 = sadd.s32 1, %s16
    $region7: #{tpu_custom_call.1} parent=1 // loop_footer_branch
      %15 = sbr.rel target = $region3
    $region8: #{tpu_custom_call.1} parent=1 // loop_exit
      _
    %299 = vsyncpa [#allocation3], 1
    %s300 = scalar_lea.sflag [#allocation3], 1
    %301 = vsyncpa %s300, 1
    %302 = vsyncpa [#allocation6], 1
    %303 = vsyncpa [#allocation4], 1
    %s304 = scalar_lea.sflag [#allocation4], 1
    %305 = vsyncpa %s304, 1

</llo_original>
